<compile_context>
chip_gen: v7x
topology: tpu7x:2x2x1
jax: 0.10.0
libtpu: 0.0.40
codegen_flags: <defaults>
</compile_context>

<pallas_src>
import jax
import jax.numpy as jnp
from jax.experimental import pallas as pl
from jax.experimental.pallas import tpu as pltpu


def _blur_body(x_ref, o_ref):
    """x_ref / o_ref: (TILE_BC, H, W) VMEM tiles. Separable reflect-padded blur."""
    x = x_ref[...].astype(jnp.float32)

    # Row pass along W (lane axis). Reflect boundary: x[-1] = x[1], x[W] = x[W-2].
    left = jnp.concatenate([x[:, :, 1:2], x[:, :, :-1]], axis=2)    # x[w-1]
    right = jnp.concatenate([x[:, :, 1:], x[:, :, -2:-1]], axis=2)  # x[w+1]
    r = 0.5 * x + 0.25 * (left + right)

    # Column pass along H (sublane axis). Same reflect boundary.
    up = jnp.concatenate([r[:, 1:2, :], r[:, :-1, :]], axis=1)      # r[h-1]
    down = jnp.concatenate([r[:, 1:, :], r[:, -2:-1, :]], axis=1)   # r[h+1]
    y = 0.5 * r + 0.25 * (up + down)

    o_ref[...] = y.astype(o_ref.dtype)


def _pick_tile_bc(bc, h, w, vmem_budget_bytes=16 * 1024 * 1024):
    """Largest divisor of bc whose tile fits a conservative VMEM budget.

    Live-bytes model: double-buffered fp32 input + output blocks plus a few
    fp32 temporaries inside the body ~= 8x one tile's fp32 footprint.
    16 MiB budget stays safely inside the default scoped VMEM on v5e/v6e/v7x.
    """
    max_elems = max(1, vmem_budget_bytes // (4 * 8))
    cap = max(1, max_elems // (h * w))
    tile = 1
    for d in range(1, bc + 1):
        if bc % d == 0 and d <= cap:
            tile = d
    return tile


def blur_pallas(x):
    """x: (B, C, H, W) float array. Returns blurred array, same shape/dtype."""
    B, C, H, W = x.shape
    if H < 2 or W < 2:
        # Reflect padding (kornia border_type='reflect') needs H >= 2 and W >= 2.
        raise ValueError("Blur with reflect padding requires H >= 2 and W >= 2")

    bc = B * C
    x2 = x.reshape(bc, H, W)  # contiguous reshape: free, no extra HBM pass
    tile_bc = _pick_tile_bc(bc, H, W)

    # TODO(synk): for very large H*W planes (e.g. 4k x 4k fp32), additionally
    # tile H with a 1-row halo so a single block still fits v7x's 64 MiB VMEM.
    out = pl.pallas_call(
        _blur_body,
        out_shape=jax.ShapeDtypeStruct((bc, H, W), x.dtype),
        grid_spec=pltpu.PrefetchScalarGridSpec(
            num_scalar_prefetch=0,
            grid=(bc // tile_bc,),
            in_specs=[pl.BlockSpec((tile_bc, H, W), lambda i: (i, 0, 0))],
            out_specs=pl.BlockSpec((tile_bc, H, W), lambda i: (i, 0, 0)),
        ),
        compiler_params=pltpu.CompilerParams(
            dimension_semantics=("parallel",),
        ),
    )(x2)

    return out.reshape(B, C, H, W)


# ----------------------------- reference & test -----------------------------

_BLUR_KERNEL = jnp.array(
    [[0.1, 0.2, 0.1],
     [0.2, 0.4, 0.2],
     [0.1, 0.2, 0.1]], dtype=jnp.float32
)


def _reference_blur(x):
    """Pure-JAX reference: depthwise conv with reflect padding."""
    B, C, H, W = x.shape
    k = (_BLUR_KERNEL / jnp.sum(_BLUR_KERNEL)).astype(jnp.float32)
    xp = jnp.pad(x.astype(jnp.float32), ((0, 0), (0, 0), (1, 1), (1, 1)),
                 mode="reflect")
    w = jnp.broadcast_to(k[None, None], (C, 1, 3, 3))
    out = jax.lax.conv_general_dilated(
        xp, w, window_strides=(1, 1), padding="VALID",
        dimension_numbers=("NCHW", "OIHW", "NCHW"),
        feature_group_count=C,
    )
    return out.astype(x.dtype)


if __name__ == "__main__":
    key = jax.random.PRNGKey(0)
    B, C, H, W = 2, 4, 16, 16
    x = jax.random.normal(key, (B, C, H, W), dtype=jnp.float32)

    y = jax.block_until_ready(blur_pallas(x))
    y_ref = jax.block_until_ready(_reference_blur(x))

    assert y.shape == (B, C, H, W)
    assert y.dtype == x.dtype
    assert jnp.max(jnp.abs(y - y_ref)) < 1e-5

    print("KERNEL_OK")
</pallas_src>

<mosaic_0001>
module attributes {stable_mosaic.version = 11 : i64} {
  func.func @_blur_body(%arg0: i32, %arg1: memref<8x16x16xf32, #tpu.memory_space<vmem>>, %arg2: memref<8x16x16xf32, #tpu.memory_space<vmem>>) attributes {dimension_semantics = [#tpu.dimension_semantics<parallel>], iteration_bounds = array<i64: 1>, scalar_prefetch = 0 : i64, scratch_operands = 0 : i64, tpu.core_type = #tpu.core_type<tc>, window_params = [{transform_indices = @transform_0, window_bounds = array<i64: 8, 16, 16>}, {transform_indices = @transform_1, window_bounds = array<i64: 8, 16, 16>}]} {
    %c0 = arith.constant 0 : index
    %c0_0 = arith.constant 0 : index
    %c0_1 = arith.constant 0 : index
    %0 = vector.load %arg1[%c0, %c0_0, %c0_1] : memref<8x16x16xf32, #tpu.memory_space<vmem>>, vector<8x16x16xf32>
    %1 = vector.extract_strided_slice %0 {offsets = [0, 0, 1], sizes = [8, 16, 1], strides = [1, 1, 1]} : vector<8x16x16xf32> to vector<8x16x1xf32>
    %2 = vector.extract_strided_slice %0 {offsets = [0, 0, 0], sizes = [8, 16, 15], strides = [1, 1, 1]} : vector<8x16x16xf32> to vector<8x16x15xf32>
    %3 = tpu.concatenate %1, %2 in 2 : vector<8x16x1xf32>, vector<8x16x15xf32> -> vector<8x16x16xf32>
    %4 = vector.extract_strided_slice %0 {offsets = [0, 0, 1], sizes = [8, 16, 15], strides = [1, 1, 1]} : vector<8x16x16xf32> to vector<8x16x15xf32>
    %5 = vector.extract_strided_slice %0 {offsets = [0, 0, 14], sizes = [8, 16, 1], strides = [1, 1, 1]} : vector<8x16x16xf32> to vector<8x16x1xf32>
    %6 = tpu.concatenate %4, %5 in 2 : vector<8x16x15xf32>, vector<8x16x1xf32> -> vector<8x16x16xf32>
    %cst = arith.constant 5.000000e-01 : f32
    %7 = vector.broadcast %cst : f32 to vector<8x16x16xf32>
    %8 = arith.mulf %7, %0 : vector<8x16x16xf32>
    %9 = arith.addf %3, %6 : vector<8x16x16xf32>
    %cst_2 = arith.constant 2.500000e-01 : f32
    %10 = vector.broadcast %cst_2 : f32 to vector<8x16x16xf32>
    %11 = arith.mulf %10, %9 : vector<8x16x16xf32>
    %12 = arith.addf %8, %11 : vector<8x16x16xf32>
    %13 = vector.extract_strided_slice %12 {offsets = [0, 1, 0], sizes = [8, 1, 16], strides = [1, 1, 1]} : vector<8x16x16xf32> to vector<8x1x16xf32>
    %14 = vector.extract_strided_slice %12 {offsets = [0, 0, 0], sizes = [8, 15, 16], strides = [1, 1, 1]} : vector<8x16x16xf32> to vector<8x15x16xf32>
    %15 = tpu.concatenate %13, %14 in 1 : vector<8x1x16xf32>, vector<8x15x16xf32> -> vector<8x16x16xf32>
    %16 = vector.extract_strided_slice %12 {offsets = [0, 1, 0], sizes = [8, 15, 16], strides = [1, 1, 1]} : vector<8x16x16xf32> to vector<8x15x16xf32>
    %17 = vector.extract_strided_slice %12 {offsets = [0, 14, 0], sizes = [8, 1, 16], strides = [1, 1, 1]} : vector<8x16x16xf32> to vector<8x1x16xf32>
    %18 = tpu.concatenate %16, %17 in 1 : vector<8x15x16xf32>, vector<8x1x16xf32> -> vector<8x16x16xf32>
    %cst_3 = arith.constant 5.000000e-01 : f32
    %19 = vector.broadcast %cst_3 : f32 to vector<8x16x16xf32>
    %20 = arith.mulf %19, %12 : vector<8x16x16xf32>
    %21 = arith.addf %15, %18 : vector<8x16x16xf32>
    %cst_4 = arith.constant 2.500000e-01 : f32
    %22 = vector.broadcast %cst_4 : f32 to vector<8x16x16xf32>
    %23 = arith.mulf %22, %21 : vector<8x16x16xf32>
    %24 = arith.addf %20, %23 : vector<8x16x16xf32>
    %c0_5 = arith.constant 0 : index
    %c0_6 = arith.constant 0 : index
    %c0_7 = arith.constant 0 : index
    %25 = vector.load %arg2[%c0_5, %c0_6, %c0_7] : memref<8x16x16xf32, #tpu.memory_space<vmem>>, vector<8x16x16xf32>
    tpu.vector_store %arg2[%c0_5, %c0_6, %c0_7], %24 {strides = array<i32>} : memref<8x16x16xf32, #tpu.memory_space<vmem>>, vector<8x16x16xf32>,
    return
  }
  func.func @transform_0(%arg0: i32) -> (i32, i32, i32) {
    %c0_i32 = arith.constant 0 : i32
    %c0_i32_0 = arith.constant 0 : i32
    %c0_i32_1 = arith.constant 0 : i32
    return %arg0, %c0_i32, %c0_i32_0 : i32, i32, i32
  }
  func.func @transform_1(%arg0: i32) -> (i32, i32, i32) {
    %c0_i32 = arith.constant 0 : i32
    %c0_i32_0 = arith.constant 0 : i32
    %c0_i32_1 = arith.constant 0 : i32
    return %arg0, %c0_i32, %c0_i32_0 : i32, i32, i32
  }
}

</mosaic_0001>

<llo_original>
// kernel: tpu_custom_call.1
$region0: #{tpu_custom_call.1}
  #allocation0 [shape = 'u32[]', space=smem, size = 0x4, offset = 0x4, fixed_abs, tag = 'smem constant byte address 0x4 - core index']
  #allocation1 [shape = 'u32[144,128]{1,0:T(1,128)}', space=vmem, size = 0x12000, scoped, tag = 'internal scratch']
  %s0 = inlined_call_operand.hbm [shape: f32[8,16,16], index: 0, kind: input, shape index: {}]
  %s1 = inlined_call_operand.hbm [shape: f32[8,16,16], index: 1, kind: output, shape index: {}]
  %s2 = sld [smem:[#allocation0]]
  $region18: #{tpu_custom_call.1} parent=0
    _
  %s4 = ssub.s32 1, %s2
  %s5 = scalar_select 0, %s4, %s2
  $region1: #{tpu_custom_call.1} parent=0
    #allocation2 [shape = 'u8[65536]{0}', space=vmem, size = 0x10000, scoped, tag = 'input window, operand 0, single buffered']
    #allocation3 [shape = 's32[1]{0}', space=sflag, size = 0x4, scoped, tag = 'scoped memory for tpu_custom_call.1']
    #allocation4 [shape = 's32[1]{0}', space=sflag, size = 0x4, scoped, tag = 'scoped memory for tpu_custom_call.1']
    #allocation5 [shape = 'u8[65536]{0}', space=vmem, size = 0x10000, scoped, tag = 'output window, operand 0, single buffered']
    %6 = vsyncpa [#allocation3], 0
    %7 = vsyncpa [#allocation4], 0
    // Predicated region
    $region2: #{tpu_custom_call.1} parent=1 // pred_check
      _
    $region3: #{tpu_custom_call.1} parent=1 // pred_check_branch
      %9 = sbr.rel (0) target = $region5
    $region4: #{tpu_custom_call.1} parent=1 // pred_region
      %s11 = ssub.s32 2048, 2048
      %12 = vsyncadd [#allocation3], %s11
      %s13 = sshll.u32 [#allocation2], 4
      %s14 = int_to_ptr.vmem [resolvable:$true] %s13
      %19 = dma.hbm_to_vmem [thread:$0]  %s0, 2048, %s14, [#allocation3], 128, 128, 8
    $region5: #{tpu_custom_call.1} parent=1 // pred_fallthru
      _
    // Predicated region
    $region6: #{tpu_custom_call.1} parent=1 // pred_check
      _
    $region7: #{tpu_custom_call.1} parent=1 // pred_check_branch
      %21 = sbr.rel (0) target = $region9
    $region8: #{tpu_custom_call.1} parent=1 // pred_region
      %22 = dma.done [#allocation3], 2048
    $region9: #{tpu_custom_call.1} parent=1 // pred_fallthru
      _
    %v23 = vld [vmem:[#allocation2] sm:$0xff]
    %v24 = vld [vmem:[#allocation2 + $0x8] sm:$0xff]
    %v25 = vld [vmem:[#allocation2 + $0x10] sm:$0xff]
    %v26 = vld [vmem:[#allocation2 + $0x18] sm:$0xff]
    %v27 = vld [vmem:[#allocation2 + $0x20] sm:$0xff]
    %v28 = vld [vmem:[#allocation2 + $0x28] sm:$0xff]
    %v29 = vld [vmem:[#allocation2 + $0x30] sm:$0xff]
    %v30 = vld [vmem:[#allocation2 + $0x38] sm:$0xff]
    %v31 = vld [vmem:[#allocation2 + $0x40] sm:$0xff]
    %v32 = vld [vmem:[#allocation2 + $0x48] sm:$0xff]
    %v33 = vld [vmem:[#allocation2 + $0x50] sm:$0xff]
    %v34 = vld [vmem:[#allocation2 + $0x58] sm:$0xff]
    %v35 = vld [vmem:[#allocation2 + $0x60] sm:$0xff]
    %v36 = vld [vmem:[#allocation2 + $0x68] sm:$0xff]
    %v37 = vld [vmem:[#allocation2 + $0x70] sm:$0xff]
    %v38 = vld [vmem:[#allocation2 + $0x78] sm:$0xff]
    %55 = vrot.lane.b32.xlu0 %v23, 127
    %v56 = vpop.permute.xlu0 %55
    %57 = vrot.lane.b32.xlu0 %v24, 127
    %v58 = vpop.permute.xlu0 %57
    %59 = vrot.lane.b32.xlu0 %v25, 127
    %v60 = vpop.permute.xlu0 %59
    %61 = vrot.lane.b32.xlu0 %v26, 127
    %v62 = vpop.permute.xlu0 %61
    %63 = vrot.lane.b32.xlu0 %v27, 127
    %v64 = vpop.permute.xlu0 %63
    %65 = vrot.lane.b32.xlu0 %v28, 127
    %v66 = vpop.permute.xlu0 %65
    %67 = vrot.lane.b32.xlu0 %v29, 127
    %v68 = vpop.permute.xlu0 %67
    %69 = vrot.lane.b32.xlu0 %v30, 127
    %v70 = vpop.permute.xlu0 %69
    %71 = vrot.lane.b32.xlu0 %v31, 127
    %v72 = vpop.permute.xlu0 %71
    %73 = vrot.lane.b32.xlu0 %v32, 127
    %v74 = vpop.permute.xlu0 %73
    %75 = vrot.lane.b32.xlu0 %v33, 127
    %v76 = vpop.permute.xlu0 %75
    %77 = vrot.lane.b32.xlu0 %v34, 127
    %v78 = vpop.permute.xlu0 %77
    %79 = vrot.lane.b32.xlu0 %v35, 127
    %v80 = vpop.permute.xlu0 %79
    %81 = vrot.lane.b32.xlu0 %v36, 127
    %v82 = vpop.permute.xlu0 %81
    %83 = vrot.lane.b32.xlu0 %v37, 127
    %v84 = vpop.permute.xlu0 %83
    %85 = vrot.lane.b32.xlu0 %v38, 127
    %v86 = vpop.permute.xlu0 %85
    %103 = vrot.lane.b32.xlu0 %v23, 1
    %v104 = vpop.permute.xlu0 %103
    %105 = vrot.lane.b32.xlu0 %v24, 1
    %v106 = vpop.permute.xlu0 %105
    %107 = vrot.lane.b32.xlu0 %v25, 1
    %v108 = vpop.permute.xlu0 %107
    %109 = vrot.lane.b32.xlu0 %v26, 1
    %v110 = vpop.permute.xlu0 %109
    %111 = vrot.lane.b32.xlu0 %v27, 1
    %v112 = vpop.permute.xlu0 %111
    %113 = vrot.lane.b32.xlu0 %v28, 1
    %v114 = vpop.permute.xlu0 %113
    %115 = vrot.lane.b32.xlu0 %v29, 1
    %v116 = vpop.permute.xlu0 %115
    %117 = vrot.lane.b32.xlu0 %v30, 1
    %v118 = vpop.permute.xlu0 %117
    %119 = vrot.lane.b32.xlu0 %v31, 1
    %v120 = vpop.permute.xlu0 %119
    %121 = vrot.lane.b32.xlu0 %v32, 1
    %v122 = vpop.permute.xlu0 %121
    %123 = vrot.lane.b32.xlu0 %v33, 1
    %v124 = vpop.permute.xlu0 %123
    %125 = vrot.lane.b32.xlu0 %v34, 1
    %v126 = vpop.permute.xlu0 %125
    %127 = vrot.lane.b32.xlu0 %v35, 1
    %v128 = vpop.permute.xlu0 %127
    %129 = vrot.lane.b32.xlu0 %v36, 1
    %v130 = vpop.permute.xlu0 %129
    %131 = vrot.lane.b32.xlu0 %v37, 1
    %v132 = vpop.permute.xlu0 %131
    %133 = vrot.lane.b32.xlu0 %v38, 1
    %v134 = vpop.permute.xlu0 %133
    %vm151 = vcmask 7168
    %v152 = vsel %vm151, %v56, %v104
    %v153 = vsel %vm151, %v58, %v106
    %v154 = vsel %vm151, %v60, %v108
    %v155 = vsel %vm151, %v62, %v110
    %v156 = vsel %vm151, %v64, %v112
    %v157 = vsel %vm151, %v66, %v114
    %v158 = vsel %vm151, %v68, %v116
    %v159 = vsel %vm151, %v70, %v118
    %v160 = vsel %vm151, %v72, %v120
    %v161 = vsel %vm151, %v74, %v122
    %v162 = vsel %vm151, %v76, %v124
    %v163 = vsel %vm151, %v78, %v126
    %v164 = vsel %vm151, %v80, %v128
    %v165 = vsel %vm151, %v82, %v130
    %v166 = vsel %vm151, %v84, %v132
    %v167 = vsel %vm151, %v86, %v134
    %vm168 = vcmask 121856
    %v169 = vsel %vm168, %v56, %v104
    %v170 = vsel %vm168, %v58, %v106
    %v171 = vsel %vm168, %v60, %v108
    %v172 = vsel %vm168, %v62, %v110
    %v173 = vsel %vm168, %v64, %v112
    %v174 = vsel %vm168, %v66, %v114
    %v175 = vsel %vm168, %v68, %v116
    %v176 = vsel %vm168, %v70, %v118
    %v177 = vsel %vm168, %v72, %v120
    %v178 = vsel %vm168, %v74, %v122
    %v179 = vsel %vm168, %v76, %v124
    %v180 = vsel %vm168, %v78, %v126
    %v181 = vsel %vm168, %v80, %v128
    %v182 = vsel %vm168, %v82, %v130
    %v183 = vsel %vm168, %v84, %v132
    %v184 = vsel %vm168, %v86, %v134
    %v185 = vmul.f32 %v23, 0.5
    %v186 = vmul.f32 %v24, 0.5
    %v187 = vmul.f32 %v25, 0.5
    %v188 = vmul.f32 %v26, 0.5
    %v189 = vmul.f32 %v27, 0.5
    %v190 = vmul.f32 %v28, 0.5
    %v191 = vmul.f32 %v29, 0.5
    %v192 = vmul.f32 %v30, 0.5
    %v193 = vmul.f32 %v31, 0.5
    %v194 = vmul.f32 %v32, 0.5
    %v195 = vmul.f32 %v33, 0.5
    %v196 = vmul.f32 %v34, 0.5
    %v197 = vmul.f32 %v35, 0.5
    %v198 = vmul.f32 %v36, 0.5
    %v199 = vmul.f32 %v37, 0.5
    %v200 = vmul.f32 %v38, 0.5
    %v201 = vadd.f32 %v152, %v169
    %v202 = vadd.f32 %v153, %v170
    %v203 = vadd.f32 %v154, %v171
    %v204 = vadd.f32 %v155, %v172
    %v205 = vadd.f32 %v156, %v173
    %v206 = vadd.f32 %v157, %v174
    %v207 = vadd.f32 %v158, %v175
    %v208 = vadd.f32 %v159, %v176
    %v209 = vadd.f32 %v160, %v177
    %v210 = vadd.f32 %v161, %v178
    %v211 = vadd.f32 %v162, %v179
    %v212 = vadd.f32 %v163, %v180
    %v213 = vadd.f32 %v164, %v181
    %v214 = vadd.f32 %v165, %v182
    %v215 = vadd.f32 %v166, %v183
    %v216 = vadd.f32 %v167, %v184
    %v217 = vmul.f32 %v201, 0.25
    %v218 = vmul.f32 %v202, 0.25
    %v219 = vmul.f32 %v203, 0.25
    %v220 = vmul.f32 %v204, 0.25
    %v221 = vmul.f32 %v205, 0.25
    %v222 = vmul.f32 %v206, 0.25
    %v223 = vmul.f32 %v207, 0.25
    %v224 = vmul.f32 %v208, 0.25
    %v225 = vmul.f32 %v209, 0.25
    %v226 = vmul.f32 %v210, 0.25
    %v227 = vmul.f32 %v211, 0.25
    %v228 = vmul.f32 %v212, 0.25
    %v229 = vmul.f32 %v213, 0.25
    %v230 = vmul.f32 %v214, 0.25
    %v231 = vmul.f32 %v215, 0.25
    %v232 = vmul.f32 %v216, 0.25
    %v233 = vadd.f32 %v185, %v217
    %v234 = vadd.f32 %v186, %v218
    %v235 = vadd.f32 %v187, %v219
    %v236 = vadd.f32 %v188, %v220
    %v237 = vadd.f32 %v189, %v221
    %v238 = vadd.f32 %v190, %v222
    %v239 = vadd.f32 %v191, %v223
    %v240 = vadd.f32 %v192, %v224
    %v241 = vadd.f32 %v193, %v225
    %v242 = vadd.f32 %v194, %v226
    %v243 = vadd.f32 %v195, %v227
    %v244 = vadd.f32 %v196, %v228
    %v245 = vadd.f32 %v197, %v229
    %v246 = vadd.f32 %v198, %v230
    %v247 = vadd.f32 %v199, %v231
    %v248 = vadd.f32 %v200, %v232
    %v257 = vrot.slane %v233, 1
    %v258 = vrot.slane %v235, 1
    %v259 = vrot.slane %v237, 1
    %v260 = vrot.slane %v239, 1
    %v261 = vrot.slane %v241, 1
    %v262 = vrot.slane %v243, 1
    %v263 = vrot.slane %v245, 1
    %v264 = vrot.slane %v247, 1
    %vm281 = vcmask 1040384
    %v282 = vrot.slane %v233, 7
    %v283 = vrot.slane %v234, 7
    %v284 = vsel %vm281, %v282, %v283
    %v285 = vrot.slane %v235, 7
    %v286 = vrot.slane %v236, 7
    %v287 = vsel %vm281, %v285, %v286
    %v288 = vrot.slane %v237, 7
    %v289 = vrot.slane %v238, 7
    %v290 = vsel %vm281, %v288, %v289
    %v291 = vrot.slane %v239, 7
    %v292 = vrot.slane %v240, 7
    %v293 = vsel %vm281, %v291, %v292
    %v294 = vrot.slane %v241, 7
    %v295 = vrot.slane %v242, 7
    %v296 = vsel %vm281, %v294, %v295
    %v297 = vrot.slane %v243, 7
    %v298 = vrot.slane %v244, 7
    %v299 = vsel %vm281, %v297, %v298
    %v300 = vrot.slane %v245, 7
    %v301 = vrot.slane %v246, 7
    %v302 = vsel %vm281, %v300, %v301
    %v303 = vrot.slane %v247, 7
    %v304 = vrot.slane %v248, 7
    %v305 = vsel %vm281, %v303, %v304
    %v322 = vsel %vm281, %v257, %v282
    %v323 = vsel %vm281, %v258, %v285
    %v324 = vsel %vm281, %v259, %v288
    %v325 = vsel %vm281, %v260, %v291
    %v326 = vsel %vm281, %v261, %v294
    %v327 = vsel %vm281, %v262, %v297
    %v328 = vsel %vm281, %v263, %v300
    %v329 = vsel %vm281, %v264, %v303
    %vm330 = vcmask 1046528
    %v331 = vrot.slane %v234, 1
    %v332 = vsel %vm330, %v257, %v331
    %v333 = vrot.slane %v236, 1
    %v334 = vsel %vm330, %v258, %v333
    %v335 = vrot.slane %v238, 1
    %v336 = vsel %vm330, %v259, %v335
    %v337 = vrot.slane %v240, 1
    %v338 = vsel %vm330, %v260, %v337
    %v339 = vrot.slane %v242, 1
    %v340 = vsel %vm330, %v261, %v339
    %v341 = vrot.slane %v244, 1
    %v342 = vsel %vm330, %v262, %v341
    %v343 = vrot.slane %v246, 1
    %v344 = vsel %vm330, %v263, %v343
    %v345 = vrot.slane %v248, 1
    %v346 = vsel %vm330, %v264, %v345
    %v371 = vsel %vm330, %v331, %v283
    %v372 = vsel %vm330, %v333, %v286
    %v373 = vsel %vm330, %v335, %v289
    %v374 = vsel %vm330, %v337, %v292
    %v375 = vsel %vm330, %v339, %v295
    %v376 = vsel %vm330, %v341, %v298
    %v377 = vsel %vm330, %v343, %v301
    %v378 = vsel %vm330, %v345, %v304
    %v379 = vmul.f32 %v233, 0.5
    %v380 = vmul.f32 %v234, 0.5
    %v381 = vmul.f32 %v235, 0.5
    %v382 = vmul.f32 %v236, 0.5
    %v383 = vmul.f32 %v237, 0.5
    %v384 = vmul.f32 %v238, 0.5
    %v385 = vmul.f32 %v239, 0.5
    %v386 = vmul.f32 %v240, 0.5
    %v387 = vmul.f32 %v241, 0.5
    %v388 = vmul.f32 %v242, 0.5
    %v389 = vmul.f32 %v243, 0.5
    %v390 = vmul.f32 %v244, 0.5
    %v391 = vmul.f32 %v245, 0.5
    %v392 = vmul.f32 %v246, 0.5
    %v393 = vmul.f32 %v247, 0.5
    %v394 = vmul.f32 %v248, 0.5
    %v395 = vadd.f32 %v322, %v332
    %v396 = vadd.f32 %v284, %v371
    %v397 = vadd.f32 %v323, %v334
    %v398 = vadd.f32 %v287, %v372
    %v399 = vadd.f32 %v324, %v336
    %v400 = vadd.f32 %v290, %v373
    %v401 = vadd.f32 %v325, %v338
    %v402 = vadd.f32 %v293, %v374
    %v403 = vadd.f32 %v326, %v340
    %v404 = vadd.f32 %v296, %v375
    %v405 = vadd.f32 %v327, %v342
    %v406 = vadd.f32 %v299, %v376
    %v407 = vadd.f32 %v328, %v344
    %v408 = vadd.f32 %v302, %v377
    %v409 = vadd.f32 %v329, %v346
    %v410 = vadd.f32 %v305, %v378
    %v411 = vmul.f32 %v395, 0.25
    %v412 = vmul.f32 %v396, 0.25
    %v413 = vmul.f32 %v397, 0.25
    %v414 = vmul.f32 %v398, 0.25
    %v415 = vmul.f32 %v399, 0.25
    %v416 = vmul.f32 %v400, 0.25
    %v417 = vmul.f32 %v401, 0.25
    %v418 = vmul.f32 %v402, 0.25
    %v419 = vmul.f32 %v403, 0.25
    %v420 = vmul.f32 %v404, 0.25
    %v421 = vmul.f32 %v405, 0.25
    %v422 = vmul.f32 %v406, 0.25
    %v423 = vmul.f32 %v407, 0.25
    %v424 = vmul.f32 %v408, 0.25
    %v425 = vmul.f32 %v409, 0.25
    %v426 = vmul.f32 %v410, 0.25
    %v427 = vadd.f32 %v379, %v411
    %v428 = vadd.f32 %v380, %v412
    %v429 = vadd.f32 %v381, %v413
    %v430 = vadd.f32 %v382, %v414
    %v431 = vadd.f32 %v383, %v415
    %v432 = vadd.f32 %v384, %v416
    %v433 = vadd.f32 %v385, %v417
    %v434 = vadd.f32 %v386, %v418
    %v435 = vadd.f32 %v387, %v419
    %v436 = vadd.f32 %v388, %v420
    %v437 = vadd.f32 %v389, %v421
    %v438 = vadd.f32 %v390, %v422
    %v439 = vadd.f32 %v391, %v423
    %v440 = vadd.f32 %v392, %v424
    %v441 = vadd.f32 %v393, %v425
    %v442 = vadd.f32 %v394, %v426
    %vm443 = vcmask 130048
    %444 = vst.msk [vmem:[#allocation5] sm:$0xff] %vm443, %v427
    %445 = vst.msk [vmem:[#allocation5 + $0x8] sm:$0xff] %vm443, %v428
    %446 = vst.msk [vmem:[#allocation5 + $0x10] sm:$0xff] %vm443, %v429
    %447 = vst.msk [vmem:[#allocation5 + $0x18] sm:$0xff] %vm443, %v430
    %448 = vst.msk [vmem:[#allocation5 + $0x20] sm:$0xff] %vm443, %v431
    %449 = vst.msk [vmem:[#allocation5 + $0x28] sm:$0xff] %vm443, %v432
    %450 = vst.msk [vmem:[#allocation5 + $0x30] sm:$0xff] %vm443, %v433
    %451 = vst.msk [vmem:[#allocation5 + $0x38] sm:$0xff] %vm443, %v434
    %452 = vst.msk [vmem:[#allocation5 + $0x40] sm:$0xff] %vm443, %v435
    %453 = vst.msk [vmem:[#allocation5 + $0x48] sm:$0xff] %vm443, %v436
    %454 = vst.msk [vmem:[#allocation5 + $0x50] sm:$0xff] %vm443, %v437
    %455 = vst.msk [vmem:[#allocation5 + $0x58] sm:$0xff] %vm443, %v438
    %456 = vst.msk [vmem:[#allocation5 + $0x60] sm:$0xff] %vm443, %v439
    %457 = vst.msk [vmem:[#allocation5 + $0x68] sm:$0xff] %vm443, %v440
    %458 = vst.msk [vmem:[#allocation5 + $0x70] sm:$0xff] %vm443, %v441
    %459 = vst.msk [vmem:[#allocation5 + $0x78] sm:$0xff] %vm443, %v442
    // Predicated region
    $region10: #{tpu_custom_call.1} parent=1 // pred_check
      _
    $region11: #{tpu_custom_call.1} parent=1 // pred_check_branch
      %461 = sbr.rel (0) target = $region13
    $region12: #{tpu_custom_call.1} parent=1 // pred_region
      %s463 = ssub.s32 2048, 2048
      %464 = vsyncadd [#allocation4], %s463
      %s465 = sshll.u32 [#allocation5], 4
      %s466 = int_to_ptr.vmem [resolvable:$true] %s465
      %471 = dma.vmem_to_hbm [thread:$0]  %s466, 2048, %s1, [#allocation4], 128, 128, 8
    $region13: #{tpu_custom_call.1} parent=1 // pred_fallthru
      _
    // Predicated region
    $region14: #{tpu_custom_call.1} parent=1 // pred_check
      _
    $region15: #{tpu_custom_call.1} parent=1 // pred_check_branch
      %473 = sbr.rel (0) target = $region17
    $region16: #{tpu_custom_call.1} parent=1 // pred_region
      %474 = dma.done [#allocation4], 2048
    $region17: #{tpu_custom_call.1} parent=1 // pred_fallthru
      _
    %475 = vsyncpa [#allocation3], 1
    %476 = vsyncpa [#allocation4], 1

</llo_original>
